<compile_context>
chip_gen: v5e
topology: v5e:2x2
jax: 0.10.0
libtpu: 0.0.40
codegen_flags: <defaults>
</compile_context>

<pallas_src>
import numpy as np
import jax
import jax.numpy as jnp
from jax import lax
from jax.experimental import pallas as pl
from jax.experimental.pallas import tpu as pltpu


_DEFAULT_VMEM_BUDGET = 32 * 1024 * 1024   # conservative fallback budget
_SMEM_MAX_INDICES = 64 * 1024             # whole-vector scalar-prefetch ceiling


def _round_up(x, m):
    return ((x + m - 1) // m) * m


def _vmem_budget_bytes():
    """Generation-aware VMEM budget (~48 MiB on v7x, ~96 MiB on v5e/v6e)."""
    try:
        info = pltpu.get_tpu_info()
        cap = int(getattr(info, "vmem_capacity_bytes", 0) or 0)
        if cap > 0:
            return max(_DEFAULT_VMEM_BUDGET, int(0.75 * cap))
    except Exception:
        pass
    return _DEFAULT_VMEM_BUDGET


# ----------------------------------------------------------------------------
# Pallas batched row-gather kernel: out[base + r] = ids[idx[base + r]].
# ----------------------------------------------------------------------------
def _make_gather_kernel(rows_per_block):
    n_sub = rows_per_block // 8   # number of (8, D) sublane blocks per tile

    def _gather_kernel(idx_ref, ids_ref, out_ref):
        # idx_ref: full padded index vector in SMEM (scalar prefetch).
        # ids_ref: full (N, D) ids table resident in VMEM.
        # out_ref: (R, D) lane-dense output tile for this grid step.
        tile_base = pl.program_id(0) * rows_per_block

        def body(k, carry):
            off = pl.multiple_of(k * 8, 8)        # aligned sublane offset
            # 8 scalar SMEM index reads + 8 dynamic (1, D) sublane loads.
            rows = [ids_ref[pl.ds(idx_ref[tile_base + off + r], 1), :]
                    for r in range(8)]
            # Single full (8, D) unmasked store (no vst.msk partial stores).
            out_ref[pl.ds(off, 8), :] = jnp.concatenate(rows, axis=0)
            return carry

        unroll = True if n_sub <= 16 else 8
        lax.fori_loop(0, n_sub, body, 0, unroll=unroll)

    return _gather_kernel


def gather_rows_pallas(final_ids, idx, rows_per_block=512):
    """Gather rows of final_ids (N, D) by idx (M,) in one batched Pallas call."""
    N, D = final_ids.shape
    idx_np = np.asarray(idx, dtype=np.int32)
    M = int(idx_np.shape[0])
    if M == 0:
        return jnp.zeros((0, D), dtype=final_ids.dtype)

    itemsize = jnp.dtype(final_ids.dtype).itemsize

    # Sublane-aligned rows-per-step.  Prefer >= 2 output blocks when possible
    # so the "parallel" grid axis gives each v7x TensorCore work.
    R = max(8, min(_round_up(rows_per_block, 8), _round_up(M, 8)))
    if _round_up(M, R) // R == 1 and M > 8:
        R = max(8, _round_up((M + 1) // 2, 8))
    M_pad = _round_up(M, R)
    n_blocks = M_pad // R

    # VMEM gating: resident ids table + double-buffered output tiles.
    budget = _vmem_budget_bytes()
    tile_bytes = R * D * itemsize
    vmem_need = N * D * itemsize + 2 * tile_bytes
    if vmem_need > budget or M_pad > _SMEM_MAX_INDICES:
        # TODO(synk): manual-DMA gather (memory_space=pl.ANY + make_async_copy,
        # >=4 grouped row DMAs in flight) for tables / index vectors that do
        # not fit in VMEM / SMEM.
        return jnp.take(final_ids, jnp.asarray(idx_np), axis=0)

    # Pad the index vector on the host with 0 (a valid row); pad rows are
    # sliced off after the kernel.
    idx_pad = np.pad(idx_np, (0, M_pad - M))
    idx_pad_j = jnp.asarray(idx_pad)

    grid_spec = pltpu.PrefetchScalarGridSpec(
        num_scalar_prefetch=1,
        grid=(n_blocks,),
        in_specs=[
            # Whole ids table resident in VMEM (same block every grid step).
            pl.BlockSpec((N, D), lambda i, idx_ref: (0, 0)),
        ],
        out_specs=pl.BlockSpec((R, D), lambda i, idx_ref: (i, 0)),
    )

    # Explicit scoped-VMEM limit so the Python gate and Mosaic agree on every
    # generation (v5e defaults to 16 MiB, v7x has only 64 MiB physical per TC).
    vmem_limit = int(min(budget,
                         max(32 << 20, vmem_need + 2 * tile_bytes + (4 << 20))))
    cost = pl.CostEstimate(
        flops=0, transcendentals=0,
        bytes_accessed=int(N * D * itemsize + 2 * M_pad * D * itemsize
                           + M_pad * 4))

    out = pl.pallas_call(
        _make_gather_kernel(R),
        grid_spec=grid_spec,
        out_shape=jax.ShapeDtypeStruct((M_pad, D), final_ids.dtype),
        compiler_params=pltpu.CompilerParams(
            dimension_semantics=("parallel",),
            vmem_limit_bytes=vmem_limit),
        cost_estimate=cost,
    )(idx_pad_j, final_ids)

    return out[:M]


# ----------------------------------------------------------------------------
# Deterministic KFold split matching sklearn KFold(shuffle=True, random_state=1)
# ----------------------------------------------------------------------------
def kfold_split(num_samples, n_splits, seed=1):
    rng = np.random.RandomState(seed)
    indices = np.arange(num_samples)
    rng.shuffle(indices)
    fold_sizes = np.full(n_splits, num_samples // n_splits, dtype=int)
    fold_sizes[: num_samples % n_splits] += 1
    splits = []
    current = 0
    for fs in fold_sizes:
        test_idx = indices[current:current + fs]
        mask = np.zeros(num_samples, dtype=bool)
        mask[test_idx] = True
        train_idx = np.arange(num_samples)[~mask]  # sorted, like sklearn
        splits.append((train_idx.astype(np.int32), test_idx.astype(np.int32)))
        current += fs
    return splits


# ----------------------------------------------------------------------------
# Data_divide forward
# ----------------------------------------------------------------------------
def data_divide_forward(final_ids, final_labels, fold):
    num_samples = final_ids.shape[0]
    splits = kfold_split(num_samples, fold, seed=1)

    # Fuse all gathers into ONE kernel launch: concat every fold's train and
    # test index vectors, gather once, split the result in the wrapper.
    seg_lens, all_idx = [], []
    for tr, _ in splits:
        all_idx.append(tr)
        seg_lens.append(len(tr))
    for _, te in splits:
        all_idx.append(te)
        seg_lens.append(len(te))
    all_idx_np = np.concatenate(all_idx).astype(np.int32)

    gathered_ids = gather_rows_pallas(final_ids, all_idx_np)
    # Labels (lane width 1) are gathered outside the kernel to avoid masked
    # partial stores; this is a 4-byte-per-row copy handled fine by XLA.
    gathered_lab = jnp.take(final_labels, jnp.asarray(all_idx_np), axis=0)

    offsets = np.concatenate([[0], np.cumsum(seg_lens)]).astype(int)
    train_ids_5, test_ids_5 = [], []
    train_labels_5, test_labels_5 = [], []
    for f in range(fold):
        s, e = offsets[f], offsets[f + 1]
        train_ids_5.append(gathered_ids[s:e])
        train_labels_5.append(gathered_lab[s:e])
    for f in range(fold):
        s, e = offsets[fold + f], offsets[fold + f + 1]
        test_ids_5.append(gathered_ids[s:e])
        test_labels_5.append(gathered_lab[s:e])
    return train_ids_5, test_ids_5, train_labels_5, test_labels_5


if __name__ == "__main__":
    # Small synthetic shapes: 20 samples, token-id sequences of length 128.
    num_samples, seq_len, fold = 20, 128, 5

    key = jax.random.PRNGKey(0)
    k_ids, k_lab = jax.random.split(key)
    final_ids = jax.random.randint(k_ids, (num_samples, seq_len), 0, 30000,
                                   dtype=jnp.int32)
    final_labels = jax.random.randint(k_lab, (num_samples,), 0, 2,
                                      dtype=jnp.int32)

    outs = data_divide_forward(final_ids, final_labels, fold)
    outs = jax.block_until_ready(outs)

    # Correctness check against plain numpy gather (same KFold indices).
    ids_np = np.asarray(final_ids)
    lab_np = np.asarray(final_labels)
    splits = kfold_split(num_samples, fold, seed=1)
    ok = True
    for f, (tr, te) in enumerate(splits):
        ok &= np.array_equal(np.asarray(outs[0][f]), ids_np[tr])
        ok &= np.array_equal(np.asarray(outs[1][f]), ids_np[te])
        ok &= np.array_equal(np.asarray(outs[2][f]), lab_np[tr])
        ok &= np.array_equal(np.asarray(outs[3][f]), lab_np[te])
    assert ok, "Pallas gather mismatch vs reference"
    print("KERNEL_OK")
</pallas_src>

<mosaic_0001>
module attributes {stable_mosaic.version = 11 : i64} {
  func.func @_gather_kernel(%arg0: i32, %arg1: memref<112xi32, #tpu.memory_space<smem>>, %arg2: memref<20x128xi32, #tpu.memory_space<vmem>>, %arg3: memref<56x128xi32, #tpu.memory_space<vmem>>) attributes {dimension_semantics = [#tpu.dimension_semantics<parallel>], iteration_bounds = array<i64: 2>, scalar_prefetch = 1 : i64, scratch_operands = 0 : i64, tpu.core_type = #tpu.core_type<tc>, window_params = [{pipeline_mode = #tpu.pipeline_mode<synchronous>, transform_indices = @transform_0, window_bounds = array<i64: 20, 128>}, {transform_indices = @transform_1, window_bounds = array<i64: 56, 128>}]} {
    %c56_i32 = arith.constant 56 : i32
    %0 = arith.muli %arg0, %c56_i32 : i32
    %c0_i32 = arith.constant 0 : i32
    %c8_i32 = arith.constant 8 : i32
    %1 = arith.muli %c0_i32, %c8_i32 : i32
    %2 = tpu.assume_multiple %1, 8 : i32
    %3 = arith.addi %0, %2 : i32
    %c0_i32_0 = arith.constant 0 : i32
    %4 = arith.addi %3, %c0_i32_0 : i32
    %5 = arith.index_cast %4 : i32 to index
    %6 = memref.load %arg1[%5] : memref<112xi32, #tpu.memory_space<smem>>
    %7 = arith.index_cast %6 : i32 to index
    %c0 = arith.constant 0 : index
    %8 = vector.load %arg2[%7, %c0] : memref<20x128xi32, #tpu.memory_space<vmem>>, vector<1x128xi32>
    %9 = arith.addi %0, %2 : i32
    %c1_i32 = arith.constant 1 : i32
    %10 = arith.addi %9, %c1_i32 : i32
    %11 = arith.index_cast %10 : i32 to index
    %12 = memref.load %arg1[%11] : memref<112xi32, #tpu.memory_space<smem>>
    %13 = arith.index_cast %12 : i32 to index
    %c0_1 = arith.constant 0 : index
    %14 = vector.load %arg2[%13, %c0_1] : memref<20x128xi32, #tpu.memory_space<vmem>>, vector<1x128xi32>
    %15 = arith.addi %0, %2 : i32
    %c2_i32 = arith.constant 2 : i32
    %16 = arith.addi %15, %c2_i32 : i32
    %17 = arith.index_cast %16 : i32 to index
    %18 = memref.load %arg1[%17] : memref<112xi32, #tpu.memory_space<smem>>
    %19 = arith.index_cast %18 : i32 to index
    %c0_2 = arith.constant 0 : index
    %20 = vector.load %arg2[%19, %c0_2] : memref<20x128xi32, #tpu.memory_space<vmem>>, vector<1x128xi32>
    %21 = arith.addi %0, %2 : i32
    %c3_i32 = arith.constant 3 : i32
    %22 = arith.addi %21, %c3_i32 : i32
    %23 = arith.index_cast %22 : i32 to index
    %24 = memref.load %arg1[%23] : memref<112xi32, #tpu.memory_space<smem>>
    %25 = arith.index_cast %24 : i32 to index
    %c0_3 = arith.constant 0 : index
    %26 = vector.load %arg2[%25, %c0_3] : memref<20x128xi32, #tpu.memory_space<vmem>>, vector<1x128xi32>
    %27 = arith.addi %0, %2 : i32
    %c4_i32 = arith.constant 4 : i32
    %28 = arith.addi %27, %c4_i32 : i32
    %29 = arith.index_cast %28 : i32 to index
    %30 = memref.load %arg1[%29] : memref<112xi32, #tpu.memory_space<smem>>
    %31 = arith.index_cast %30 : i32 to index
    %c0_4 = arith.constant 0 : index
    %32 = vector.load %arg2[%31, %c0_4] : memref<20x128xi32, #tpu.memory_space<vmem>>, vector<1x128xi32>
    %33 = arith.addi %0, %2 : i32
    %c5_i32 = arith.constant 5 : i32
    %34 = arith.addi %33, %c5_i32 : i32
    %35 = arith.index_cast %34 : i32 to index
    %36 = memref.load %arg1[%35] : memref<112xi32, #tpu.memory_space<smem>>
    %37 = arith.index_cast %36 : i32 to index
    %c0_5 = arith.constant 0 : index
    %38 = vector.load %arg2[%37, %c0_5] : memref<20x128xi32, #tpu.memory_space<vmem>>, vector<1x128xi32>
    %39 = arith.addi %0, %2 : i32
    %c6_i32 = arith.constant 6 : i32
    %40 = arith.addi %39, %c6_i32 : i32
    %41 = arith.index_cast %40 : i32 to index
    %42 = memref.load %arg1[%41] : memref<112xi32, #tpu.memory_space<smem>>
    %43 = arith.index_cast %42 : i32 to index
    %c0_6 = arith.constant 0 : index
    %44 = vector.load %arg2[%43, %c0_6] : memref<20x128xi32, #tpu.memory_space<vmem>>, vector<1x128xi32>
    %45 = arith.addi %0, %2 : i32
    %c7_i32 = arith.constant 7 : i32
    %46 = arith.addi %45, %c7_i32 : i32
    %47 = arith.index_cast %46 : i32 to index
    %48 = memref.load %arg1[%47] : memref<112xi32, #tpu.memory_space<smem>>
    %49 = arith.index_cast %48 : i32 to index
    %c0_7 = arith.constant 0 : index
    %50 = vector.load %arg2[%49, %c0_7] : memref<20x128xi32, #tpu.memory_space<vmem>>, vector<1x128xi32>
    %51 = tpu.concatenate %8, %14, %20, %26, %32, %38, %44, %50 in 0 : vector<1x128xi32>, vector<1x128xi32>, vector<1x128xi32>, vector<1x128xi32>, vector<1x128xi32>, vector<1x128xi32>, vector<1x128xi32>, vector<1x128xi32> -> vector<8x128xi32>
    %52 = arith.index_cast %2 : i32 to index
    %c0_8 = arith.constant 0 : index
    %53 = vector.load %arg3[%52, %c0_8] : memref<56x128xi32, #tpu.memory_space<vmem>>, vector<8x128xi32>
    tpu.vector_store %arg3[%52, %c0_8], %51 {strides = array<i32>} : memref<56x128xi32, #tpu.memory_space<vmem>>, vector<8x128xi32>,
    %c1_i32_9 = arith.constant 1 : i32
    %c8_i32_10 = arith.constant 8 : i32
    %54 = arith.muli %c1_i32_9, %c8_i32_10 : i32
    %55 = tpu.assume_multiple %54, 8 : i32
    %56 = arith.addi %0, %55 : i32
    %c0_i32_11 = arith.constant 0 : i32
    %57 = arith.addi %56, %c0_i32_11 : i32
    %58 = arith.index_cast %57 : i32 to index
    %59 = memref.load %arg1[%58] : memref<112xi32, #tpu.memory_space<smem>>
    %60 = arith.index_cast %59 : i32 to index
    %c0_12 = arith.constant 0 : index
    %61 = vector.load %arg2[%60, %c0_12] : memref<20x128xi32, #tpu.memory_space<vmem>>, vector<1x128xi32>
    %62 = arith.addi %0, %55 : i32
    %c1_i32_13 = arith.constant 1 : i32
    %63 = arith.addi %62, %c1_i32_13 : i32
    %64 = arith.index_cast %63 : i32 to index
    %65 = memref.load %arg1[%64] : memref<112xi32, #tpu.memory_space<smem>>
    %66 = arith.index_cast %65 : i32 to index
    %c0_14 = arith.constant 0 : index
    %67 = vector.load %arg2[%66, %c0_14] : memref<20x128xi32, #tpu.memory_space<vmem>>, vector<1x128xi32>
    %68 = arith.addi %0, %55 : i32
    %c2_i32_15 = arith.constant 2 : i32
    %69 = arith.addi %68, %c2_i32_15 : i32
    %70 = arith.index_cast %69 : i32 to index
    %71 = memref.load %arg1[%70] : memref<112xi32, #tpu.memory_space<smem>>
    %72 = arith.index_cast %71 : i32 to index
    %c0_16 = arith.constant 0 : index
    %73 = vector.load %arg2[%72, %c0_16] : memref<20x128xi32, #tpu.memory_space<vmem>>, vector<1x128xi32>
    %74 = arith.addi %0, %55 : i32
    %c3_i32_17 = arith.constant 3 : i32
    %75 = arith.addi %74, %c3_i32_17 : i32
    %76 = arith.index_cast %75 : i32 to index
    %77 = memref.load %arg1[%76] : memref<112xi32, #tpu.memory_space<smem>>
    %78 = arith.index_cast %77 : i32 to index
    %c0_18 = arith.constant 0 : index
    %79 = vector.load %arg2[%78, %c0_18] : memref<20x128xi32, #tpu.memory_space<vmem>>, vector<1x128xi32>
    %80 = arith.addi %0, %55 : i32
    %c4_i32_19 = arith.constant 4 : i32
    %81 = arith.addi %80, %c4_i32_19 : i32
    %82 = arith.index_cast %81 : i32 to index
    %83 = memref.load %arg1[%82] : memref<112xi32, #tpu.memory_space<smem>>
    %84 = arith.index_cast %83 : i32 to index
    %c0_20 = arith.constant 0 : index
    %85 = vector.load %arg2[%84, %c0_20] : memref<20x128xi32, #tpu.memory_space<vmem>>, vector<1x128xi32>
    %86 = arith.addi %0, %55 : i32
    %c5_i32_21 = arith.constant 5 : i32
    %87 = arith.addi %86, %c5_i32_21 : i32
    %88 = arith.index_cast %87 : i32 to index
    %89 = memref.load %arg1[%88] : memref<112xi32, #tpu.memory_space<smem>>
    %90 = arith.index_cast %89 : i32 to index
    %c0_22 = arith.constant 0 : index
    %91 = vector.load %arg2[%90, %c0_22] : memref<20x128xi32, #tpu.memory_space<vmem>>, vector<1x128xi32>
    %92 = arith.addi %0, %55 : i32
    %c6_i32_23 = arith.constant 6 : i32
    %93 = arith.addi %92, %c6_i32_23 : i32
    %94 = arith.index_cast %93 : i32 to index
    %95 = memref.load %arg1[%94] : memref<112xi32, #tpu.memory_space<smem>>
    %96 = arith.index_cast %95 : i32 to index
    %c0_24 = arith.constant 0 : index
    %97 = vector.load %arg2[%96, %c0_24] : memref<20x128xi32, #tpu.memory_space<vmem>>, vector<1x128xi32>
    %98 = arith.addi %0, %55 : i32
    %c7_i32_25 = arith.constant 7 : i32
    %99 = arith.addi %98, %c7_i32_25 : i32
    %100 = arith.index_cast %99 : i32 to index
    %101 = memref.load %arg1[%100] : memref<112xi32, #tpu.memory_space<smem>>
    %102 = arith.index_cast %101 : i32 to index
    %c0_26 = arith.constant 0 : index
    %103 = vector.load %arg2[%102, %c0_26] : memref<20x128xi32, #tpu.memory_space<vmem>>, vector<1x128xi32>
    %104 = tpu.concatenate %61, %67, %73, %79, %85, %91, %97, %103 in 0 : vector<1x128xi32>, vector<1x128xi32>, vector<1x128xi32>, vector<1x128xi32>, vector<1x128xi32>, vector<1x128xi32>, vector<1x128xi32>, vector<1x128xi32> -> vector<8x128xi32>
    %105 = arith.index_cast %55 : i32 to index
    %c0_27 = arith.constant 0 : index
    %106 = vector.load %arg3[%105, %c0_27] : memref<56x128xi32, #tpu.memory_space<vmem>>, vector<8x128xi32>
    tpu.vector_store %arg3[%105, %c0_27], %104 {strides = array<i32>} : memref<56x128xi32, #tpu.memory_space<vmem>>, vector<8x128xi32>,
    %c2_i32_28 = arith.constant 2 : i32
    %c8_i32_29 = arith.constant 8 : i32
    %107 = arith.muli %c2_i32_28, %c8_i32_29 : i32
    %108 = tpu.assume_multiple %107, 8 : i32
    %109 = arith.addi %0, %108 : i32
    %c0_i32_30 = arith.constant 0 : i32
    %110 = arith.addi %109, %c0_i32_30 : i32
    %111 = arith.index_cast %110 : i32 to index
    %112 = memref.load %arg1[%111] : memref<112xi32, #tpu.memory_space<smem>>
    %113 = arith.index_cast %112 : i32 to index
    %c0_31 = arith.constant 0 : index
    %114 = vector.load %arg2[%113, %c0_31] : memref<20x128xi32, #tpu.memory_space<vmem>>, vector<1x128xi32>
    %115 = arith.addi %0, %108 : i32
    %c1_i32_32 = arith.constant 1 : i32
    %116 = arith.addi %115, %c1_i32_32 : i32
    %117 = arith.index_cast %116 : i32 to index
    %118 = memref.load %arg1[%117] : memref<112xi32, #tpu.memory_space<smem>>
    %119 = arith.index_cast %118 : i32 to index
    %c0_33 = arith.constant 0 : index
    %120 = vector.load %arg2[%119, %c0_33] : memref<20x128xi32, #tpu.memory_space<vmem>>, vector<1x128xi32>
    %121 = arith.addi %0, %108 : i32
    %c2_i32_34 = arith.constant 2 : i32
    %122 = arith.addi %121, %c2_i32_34 : i32
    %123 = arith.index_cast %122 : i32 to index
    %124 = memref.load %arg1[%123] : memref<112xi32, #tpu.memory_space<smem>>
    %125 = arith.index_cast %124 : i32 to index
    %c0_35 = arith.constant 0 : index
    %126 = vector.load %arg2[%125, %c0_35] : memref<20x128xi32, #tpu.memory_space<vmem>>, vector<1x128xi32>
    %127 = arith.addi %0, %108 : i32
    %c3_i32_36 = arith.constant 3 : i32
    %128 = arith.addi %127, %c3_i32_36 : i32
    %129 = arith.index_cast %128 : i32 to index
    %130 = memref.load %arg1[%129] : memref<112xi32, #tpu.memory_space<smem>>
    %131 = arith.index_cast %130 : i32 to index
    %c0_37 = arith.constant 0 : index
    %132 = vector.load %arg2[%131, %c0_37] : memref<20x128xi32, #tpu.memory_space<vmem>>, vector<1x128xi32>
    %133 = arith.addi %0, %108 : i32
    %c4_i32_38 = arith.constant 4 : i32
    %134 = arith.addi %133, %c4_i32_38 : i32
    %135 = arith.index_cast %134 : i32 to index
    %136 = memref.load %arg1[%135] : memref<112xi32, #tpu.memory_space<smem>>
    %137 = arith.index_cast %136 : i32 to index
    %c0_39 = arith.constant 0 : index
    %138 = vector.load %arg2[%137, %c0_39] : memref<20x128xi32, #tpu.memory_space<vmem>>, vector<1x128xi32>
    %139 = arith.addi %0, %108 : i32
    %c5_i32_40 = arith.constant 5 : i32
    %140 = arith.addi %139, %c5_i32_40 : i32
    %141 = arith.index_cast %140 : i32 to index
    %142 = memref.load %arg1[%141] : memref<112xi32, #tpu.memory_space<smem>>
    %143 = arith.index_cast %142 : i32 to index
    %c0_41 = arith.constant 0 : index
    %144 = vector.load %arg2[%143, %c0_41] : memref<20x128xi32, #tpu.memory_space<vmem>>, vector<1x128xi32>
    %145 = arith.addi %0, %108 : i32
    %c6_i32_42 = arith.constant 6 : i32
    %146 = arith.addi %145, %c6_i32_42 : i32
    %147 = arith.index_cast %146 : i32 to index
    %148 = memref.load %arg1[%147] : memref<112xi32, #tpu.memory_space<smem>>
    %149 = arith.index_cast %148 : i32 to index
    %c0_43 = arith.constant 0 : index
    %150 = vector.load %arg2[%149, %c0_43] : memref<20x128xi32, #tpu.memory_space<vmem>>, vector<1x128xi32>
    %151 = arith.addi %0, %108 : i32
    %c7_i32_44 = arith.constant 7 : i32
    %152 = arith.addi %151, %c7_i32_44 : i32
    %153 = arith.index_cast %152 : i32 to index
    %154 = memref.load %arg1[%153] : memref<112xi32, #tpu.memory_space<smem>>
    %155 = arith.index_cast %154 : i32 to index
    %c0_45 = arith.constant 0 : index
    %156 = vector.load %arg2[%155, %c0_45] : memref<20x128xi32, #tpu.memory_space<vmem>>, vector<1x128xi32>
    %157 = tpu.concatenate %114, %120, %126, %132, %138, %144, %150, %156 in 0 : vector<1x128xi32>, vector<1x128xi32>, vector<1x128xi32>, vector<1x128xi32>, vector<1x128xi32>, vector<1x128xi32>, vector<1x128xi32>, vector<1x128xi32> -> vector<8x128xi32>
    %158 = arith.index_cast %108 : i32 to index
    %c0_46 = arith.constant 0 : index
    %159 = vector.load %arg3[%158, %c0_46] : memref<56x128xi32, #tpu.memory_space<vmem>>, vector<8x128xi32>
    tpu.vector_store %arg3[%158, %c0_46], %157 {strides = array<i32>} : memref<56x128xi32, #tpu.memory_space<vmem>>, vector<8x128xi32>,
    %c3_i32_47 = arith.constant 3 : i32
    %c8_i32_48 = arith.constant 8 : i32
    %160 = arith.muli %c3_i32_47, %c8_i32_48 : i32
    %161 = tpu.assume_multiple %160, 8 : i32
    %162 = arith.addi %0, %161 : i32
    %c0_i32_49 = arith.constant 0 : i32
    %163 = arith.addi %162, %c0_i32_49 : i32
    %164 = arith.index_cast %163 : i32 to index
    %165 = memref.load %arg1[%164] : memref<112xi32, #tpu.memory_space<smem>>
    %166 = arith.index_cast %165 : i32 to index
    %c0_50 = arith.constant 0 : index
    %167 = vector.load %arg2[%166, %c0_50] : memref<20x128xi32, #tpu.memory_space<vmem>>, vector<1x128xi32>
    %168 = arith.addi %0, %161 : i32
    %c1_i32_51 = arith.constant 1 : i32
    %169 = arith.addi %168, %c1_i32_51 : i32
    %170 = arith.index_cast %169 : i32 to index
    %171 = memref.load %arg1[%170] : memref<112xi32, #tpu.memory_space<smem>>
    %172 = arith.index_cast %171 : i32 to index
    %c0_52 = arith.constant 0 : index
    %173 = vector.load %arg2[%172, %c0_52] : memref<20x128xi32, #tpu.memory_space<vmem>>, vector<1x128xi32>
    %174 = arith.addi %0, %161 : i32
    %c2_i32_53 = arith.constant 2 : i32
    %175 = arith.addi %174, %c2_i32_53 : i32
    %176 = arith.index_cast %175 : i32 to index
    %177 = memref.load %arg1[%176] : memref<112xi32, #tpu.memory_space<smem>>
    %178 = arith.index_cast %177 : i32 to index
    %c0_54 = arith.constant 0 : index
    %179 = vector.load %arg2[%178, %c0_54] : memref<20x128xi32, #tpu.memory_space<vmem>>, vector<1x128xi32>
    %180 = arith.addi %0, %161 : i32
    %c3_i32_55 = arith.constant 3 : i32
    %181 = arith.addi %180, %c3_i32_55 : i32
    %182 = arith.index_cast %181 : i32 to index
    %183 = memref.load %arg1[%182] : memref<112xi32, #tpu.memory_space<smem>>
    %184 = arith.index_cast %183 : i32 to index
    %c0_56 = arith.constant 0 : index
    %185 = vector.load %arg2[%184, %c0_56] : memref<20x128xi32, #tpu.memory_space<vmem>>, vector<1x128xi32>
    %186 = arith.addi %0, %161 : i32
    %c4_i32_57 = arith.constant 4 : i32
    %187 = arith.addi %186, %c4_i32_57 : i32
    %188 = arith.index_cast %187 : i32 to index
    %189 = memref.load %arg1[%188] : memref<112xi32, #tpu.memory_space<smem>>
    %190 = arith.index_cast %189 : i32 to index
    %c0_58 = arith.constant 0 : index
    %191 = vector.load %arg2[%190, %c0_58] : memref<20x128xi32, #tpu.memory_space<vmem>>, vector<1x128xi32>
    %192 = arith.addi %0, %161 : i32
    %c5_i32_59 = arith.constant 5 : i32
    %193 = arith.addi %192, %c5_i32_59 : i32
    %194 = arith.index_cast %193 : i32 to index
    %195 = memref.load %arg1[%194] : memref<112xi32, #tpu.memory_space<smem>>
    %196 = arith.index_cast %195 : i32 to index
    %c0_60 = arith.constant 0 : index
    %197 = vector.load %arg2[%196, %c0_60] : memref<20x128xi32, #tpu.memory_space<vmem>>, vector<1x128xi32>
    %198 = arith.addi %0, %161 : i32
    %c6_i32_61 = arith.constant 6 : i32
    %199 = arith.addi %198, %c6_i32_61 : i32
    %200 = arith.index_cast %199 : i32 to index
    %201 = memref.load %arg1[%200] : memref<112xi32, #tpu.memory_space<smem>>
    %202 = arith.index_cast %201 : i32 to index
    %c0_62 = arith.constant 0 : index
    %203 = vector.load %arg2[%202, %c0_62] : memref<20x128xi32, #tpu.memory_space<vmem>>, vector<1x128xi32>
    %204 = arith.addi %0, %161 : i32
    %c7_i32_63 = arith.constant 7 : i32
    %205 = arith.addi %204, %c7_i32_63 : i32
    %206 = arith.index_cast %205 : i32 to index
    %207 = memref.load %arg1[%206] : memref<112xi32, #tpu.memory_space<smem>>
    %208 = arith.index_cast %207 : i32 to index
    %c0_64 = arith.constant 0 : index
    %209 = vector.load %arg2[%208, %c0_64] : memref<20x128xi32, #tpu.memory_space<vmem>>, vector<1x128xi32>
    %210 = tpu.concatenate %167, %173, %179, %185, %191, %197, %203, %209 in 0 : vector<1x128xi32>, vector<1x128xi32>, vector<1x128xi32>, vector<1x128xi32>, vector<1x128xi32>, vector<1x128xi32>, vector<1x128xi32>, vector<1x128xi32> -> vector<8x128xi32>
    %211 = arith.index_cast %161 : i32 to index
    %c0_65 = arith.constant 0 : index
    %212 = vector.load %arg3[%211, %c0_65] : memref<56x128xi32, #tpu.memory_space<vmem>>, vector<8x128xi32>
    tpu.vector_store %arg3[%211, %c0_65], %210 {strides = array<i32>} : memref<56x128xi32, #tpu.memory_space<vmem>>, vector<8x128xi32>,
    %c4_i32_66 = arith.constant 4 : i32
    %c8_i32_67 = arith.constant 8 : i32
    %213 = arith.muli %c4_i32_66, %c8_i32_67 : i32
    %214 = tpu.assume_multiple %213, 8 : i32
    %215 = arith.addi %0, %214 : i32
    %c0_i32_68 = arith.constant 0 : i32
    %216 = arith.addi %215, %c0_i32_68 : i32
    %217 = arith.index_cast %216 : i32 to index
    %218 = memref.load %arg1[%217] : memref<112xi32, #tpu.memory_space<smem>>
    %219 = arith.index_cast %218 : i32 to index
    %c0_69 = arith.constant 0 : index
    %220 = vector.load %arg2[%219, %c0_69] : memref<20x128xi32, #tpu.memory_space<vmem>>, vector<1x128xi32>
    %221 = arith.addi %0, %214 : i32
    %c1_i32_70 = arith.constant 1 : i32
    %222 = arith.addi %221, %c1_i32_70 : i32
    %223 = arith.index_cast %222 : i32 to index
    %224 = memref.load %arg1[%223] : memref<112xi32, #tpu.memory_space<smem>>
    %225 = arith.index_cast %224 : i32 to index
    %c0_71 = arith.constant 0 : index
    %226 = vector.load %arg2[%225, %c0_71] : memref<20x128xi32, #tpu.memory_space<vmem>>, vector<1x128xi32>
    %227 = arith.addi %0, %214 : i32
    %c2_i32_72 = arith.constant 2 : i32
    %228 = arith.addi %227, %c2_i32_72 : i32
    %229 = arith.index_cast %228 : i32 to index
    %230 = memref.load %arg1[%229] : memref<112xi32, #tpu.memory_space<smem>>
    %231 = arith.index_cast %230 : i32 to index
    %c0_73 = arith.constant 0 : index
    %232 = vector.load %arg2[%231, %c0_73] : memref<20x128xi32, #tpu.memory_space<vmem>>, vector<1x128xi32>
    %233 = arith.addi %0, %214 : i32
    %c3_i32_74 = arith.constant 3 : i32
    %234 = arith.addi %233, %c3_i32_74 : i32
    %235 = arith.index_cast %234 : i32 to index
    %236 = memref.load %arg1[%235] : memref<112xi32, #tpu.memory_space<smem>>
    %237 = arith.index_cast %236 : i32 to index
    %c0_75 = arith.constant 0 : index
    %238 = vector.load %arg2[%237, %c0_75] : memref<20x128xi32, #tpu.memory_space<vmem>>, vector<1x128xi32>
    %239 = arith.addi %0, %214 : i32
    %c4_i32_76 = arith.constant 4 : i32
    %240 = arith.addi %239, %c4_i32_76 : i32
    %241 = arith.index_cast %240 : i32 to index
    %242 = memref.load %arg1[%241] : memref<112xi32, #tpu.memory_space<smem>>
    %243 = arith.index_cast %242 : i32 to index
    %c0_77 = arith.constant 0 : index
    %244 = vector.load %arg2[%243, %c0_77] : memref<20x128xi32, #tpu.memory_space<vmem>>, vector<1x128xi32>
    %245 = arith.addi %0, %214 : i32
    %c5_i32_78 = arith.constant 5 : i32
    %246 = arith.addi %245, %c5_i32_78 : i32
    %247 = arith.index_cast %246 : i32 to index
    %248 = memref.load %arg1[%247] : memref<112xi32, #tpu.memory_space<smem>>
    %249 = arith.index_cast %248 : i32 to index
    %c0_79 = arith.constant 0 : index
    %250 = vector.load %arg2[%249, %c0_79] : memref<20x128xi32, #tpu.memory_space<vmem>>, vector<1x128xi32>
    %251 = arith.addi %0, %214 : i32
    %c6_i32_80 = arith.constant 6 : i32
    %252 = arith.addi %251, %c6_i32_80 : i32
    %253 = arith.index_cast %252 : i32 to index
    %254 = memref.load %arg1[%253] : memref<112xi32, #tpu.memory_space<smem>>
    %255 = arith.index_cast %254 : i32 to index
    %c0_81 = arith.constant 0 : index
    %256 = vector.load %arg2[%255, %c0_81] : memref<20x128xi32, #tpu.memory_space<vmem>>, vector<1x128xi32>
    %257 = arith.addi %0, %214 : i32
    %c7_i32_82 = arith.constant 7 : i32
    %258 = arith.addi %257, %c7_i32_82 : i32
    %259 = arith.index_cast %258 : i32 to index
    %260 = memref.load %arg1[%259] : memref<112xi32, #tpu.memory_space<smem>>
    %261 = arith.index_cast %260 : i32 to index
    %c0_83 = arith.constant 0 : index
    %262 = vector.load %arg2[%261, %c0_83] : memref<20x128xi32, #tpu.memory_space<vmem>>, vector<1x128xi32>
    %263 = tpu.concatenate %220, %226, %232, %238, %244, %250, %256, %262 in 0 : vector<1x128xi32>, vector<1x128xi32>, vector<1x128xi32>, vector<1x128xi32>, vector<1x128xi32>, vector<1x128xi32>, vector<1x128xi32>, vector<1x128xi32> -> vector<8x128xi32>
    %264 = arith.index_cast %214 : i32 to index
    %c0_84 = arith.constant 0 : index
    %265 = vector.load %arg3[%264, %c0_84] : memref<56x128xi32, #tpu.memory_space<vmem>>, vector<8x128xi32>
    tpu.vector_store %arg3[%264, %c0_84], %263 {strides = array<i32>} : memref<56x128xi32, #tpu.memory_space<vmem>>, vector<8x128xi32>,
    %c5_i32_85 = arith.constant 5 : i32
    %c8_i32_86 = arith.constant 8 : i32
    %266 = arith.muli %c5_i32_85, %c8_i32_86 : i32
    %267 = tpu.assume_multiple %266, 8 : i32
    %268 = arith.addi %0, %267 : i32
    %c0_i32_87 = arith.constant 0 : i32
    %269 = arith.addi %268, %c0_i32_87 : i32
    %270 = arith.index_cast %269 : i32 to index
    %271 = memref.load %arg1[%270] : memref<112xi32, #tpu.memory_space<smem>>
    %272 = arith.index_cast %271 : i32 to index
    %c0_88 = arith.constant 0 : index
    %273 = vector.load %arg2[%272, %c0_88] : memref<20x128xi32, #tpu.memory_space<vmem>>, vector<1x128xi32>
    %274 = arith.addi %0, %267 : i32
    %c1_i32_89 = arith.constant 1 : i32
    %275 = arith.addi %274, %c1_i32_89 : i32
    %276 = arith.index_cast %275 : i32 to index
    %277 = memref.load %arg1[%276] : memref<112xi32, #tpu.memory_space<smem>>
    %278 = arith.index_cast %277 : i32 to index
    %c0_90 = arith.constant 0 : index
    %279 = vector.load %arg2[%278, %c0_90] : memref<20x128xi32, #tpu.memory_space<vmem>>, vector<1x128xi32>
    %280 = arith.addi %0, %267 : i32
    %c2_i32_91 = arith.constant 2 : i32
    %281 = arith.addi %280, %c2_i32_91 : i32
    %282 = arith.index_cast %281 : i32 to index
    %283 = memref.load %arg1[%282] : memref<112xi32, #tpu.memory_space<smem>>
    %284 = arith.index_cast %283 : i32 to index
    %c0_92 = arith.constant 0 : index
    %285 = vector.load %arg2[%284, %c0_92] : memref<20x128xi32, #tpu.memory_space<vmem>>, vector<1x128xi32>
    %286 = arith.addi %0, %267 : i32
    %c3_i32_93 = arith.constant 3 : i32
    %287 = arith.addi %286, %c3_i32_93 : i32
    %288 = arith.index_cast %287 : i32 to index
    %289 = memref.load %arg1[%288] : memref<112xi32, #tpu.memory_space<smem>>
    %290 = arith.index_cast %289 : i32 to index
    %c0_94 = arith.constant 0 : index
    %291 = vector.load %arg2[%290, %c0_94] : memref<20x128xi32, #tpu.memory_space<vmem>>, vector<1x128xi32>
    %292 = arith.addi %0, %267 : i32
    %c4_i32_95 = arith.constant 4 : i32
    %293 = arith.addi %292, %c4_i32_95 : i32
    %294 = arith.index_cast %293 : i32 to index
    %295 = memref.load %arg1[%294] : memref<112xi32, #tpu.memory_space<smem>>
    %296 = arith.index_cast %295 : i32 to index
    %c0_96 = arith.constant 0 : index
    %297 = vector.load %arg2[%296, %c0_96] : memref<20x128xi32, #tpu.memory_space<vmem>>, vector<1x128xi32>
    %298 = arith.addi %0, %267 : i32
    %c5_i32_97 = arith.constant 5 : i32
    %299 = arith.addi %298, %c5_i32_97 : i32
    %300 = arith.index_cast %299 : i32 to index
    %301 = memref.load %arg1[%300] : memref<112xi32, #tpu.memory_space<smem>>
    %302 = arith.index_cast %301 : i32 to index
    %c0_98 = arith.constant 0 : index
    %303 = vector.load %arg2[%302, %c0_98] : memref<20x128xi32, #tpu.memory_space<vmem>>, vector<1x128xi32>
    %304 = arith.addi %0, %267 : i32
    %c6_i32_99 = arith.constant 6 : i32
    %305 = arith.addi %304, %c6_i32_99 : i32
    %306 = arith.index_cast %305 : i32 to index
    %307 = memref.load %arg1[%306] : memref<112xi32, #tpu.memory_space<smem>>
    %308 = arith.index_cast %307 : i32 to index
    %c0_100 = arith.constant 0 : index
    %309 = vector.load %arg2[%308, %c0_100] : memref<20x128xi32, #tpu.memory_space<vmem>>, vector<1x128xi32>
    %310 = arith.addi %0, %267 : i32
    %c7_i32_101 = arith.constant 7 : i32
    %311 = arith.addi %310, %c7_i32_101 : i32
    %312 = arith.index_cast %311 : i32 to index
    %313 = memref.load %arg1[%312] : memref<112xi32, #tpu.memory_space<smem>>
    %314 = arith.index_cast %313 : i32 to index
    %c0_102 = arith.constant 0 : index
    %315 = vector.load %arg2[%314, %c0_102] : memref<20x128xi32, #tpu.memory_space<vmem>>, vector<1x128xi32>
    %316 = tpu.concatenate %273, %279, %285, %291, %297, %303, %309, %315 in 0 : vector<1x128xi32>, vector<1x128xi32>, vector<1x128xi32>, vector<1x128xi32>, vector<1x128xi32>, vector<1x128xi32>, vector<1x128xi32>, vector<1x128xi32> -> vector<8x128xi32>
    %317 = arith.index_cast %267 : i32 to index
    %c0_103 = arith.constant 0 : index
    %318 = vector.load %arg3[%317, %c0_103] : memref<56x128xi32, #tpu.memory_space<vmem>>, vector<8x128xi32>
    tpu.vector_store %arg3[%317, %c0_103], %316 {strides = array<i32>} : memref<56x128xi32, #tpu.memory_space<vmem>>, vector<8x128xi32>,
    %c6_i32_104 = arith.constant 6 : i32
    %c8_i32_105 = arith.constant 8 : i32
    %319 = arith.muli %c6_i32_104, %c8_i32_105 : i32
    %320 = tpu.assume_multiple %319, 8 : i32
    %321 = arith.addi %0, %320 : i32
    %c0_i32_106 = arith.constant 0 : i32
    %322 = arith.addi %321, %c0_i32_106 : i32
    %323 = arith.index_cast %322 : i32 to index
    %324 = memref.load %arg1[%323] : memref<112xi32, #tpu.memory_space<smem>>
    %325 = arith.index_cast %324 : i32 to index
    %c0_107 = arith.constant 0 : index
    %326 = vector.load %arg2[%325, %c0_107] : memref<20x128xi32, #tpu.memory_space<vmem>>, vector<1x128xi32>
    %327 = arith.addi %0, %320 : i32
    %c1_i32_108 = arith.constant 1 : i32
    %328 = arith.addi %327, %c1_i32_108 : i32
    %329 = arith.index_cast %328 : i32 to index
    %330 = memref.load %arg1[%329] : memref<112xi32, #tpu.memory_space<smem>>
    %331 = arith.index_cast %330 : i32 to index
    %c0_109 = arith.constant 0 : index
    %332 = vector.load %arg2[%331, %c0_109] : memref<20x128xi32, #tpu.memory_space<vmem>>, vector<1x128xi32>
    %333 = arith.addi %0, %320 : i32
    %c2_i32_110 = arith.constant 2 : i32
    %334 = arith.addi %333, %c2_i32_110 : i32
    %335 = arith.index_cast %334 : i32 to index
    %336 = memref.load %arg1[%335] : memref<112xi32, #tpu.memory_space<smem>>
    %337 = arith.index_cast %336 : i32 to index
    %c0_111 = arith.constant 0 : index
    %338 = vector.load %arg2[%337, %c0_111] : memref<20x128xi32, #tpu.memory_space<vmem>>, vector<1x128xi32>
    %339 = arith.addi %0, %320 : i32
    %c3_i32_112 = arith.constant 3 : i32
    %340 = arith.addi %339, %c3_i32_112 : i32
    %341 = arith.index_cast %340 : i32 to index
    %342 = memref.load %arg1[%341] : memref<112xi32, #tpu.memory_space<smem>>
    %343 = arith.index_cast %342 : i32 to index
    %c0_113 = arith.constant 0 : index
    %344 = vector.load %arg2[%343, %c0_113] : memref<20x128xi32, #tpu.memory_space<vmem>>, vector<1x128xi32>
    %345 = arith.addi %0, %320 : i32
    %c4_i32_114 = arith.constant 4 : i32
    %346 = arith.addi %345, %c4_i32_114 : i32
    %347 = arith.index_cast %346 : i32 to index
    %348 = memref.load %arg1[%347] : memref<112xi32, #tpu.memory_space<smem>>
    %349 = arith.index_cast %348 : i32 to index
    %c0_115 = arith.constant 0 : index
    %350 = vector.load %arg2[%349, %c0_115] : memref<20x128xi32, #tpu.memory_space<vmem>>, vector<1x128xi32>
    %351 = arith.addi %0, %320 : i32
    %c5_i32_116 = arith.constant 5 : i32
    %352 = arith.addi %351, %c5_i32_116 : i32
    %353 = arith.index_cast %352 : i32 to index
    %354 = memref.load %arg1[%353] : memref<112xi32, #tpu.memory_space<smem>>
    %355 = arith.index_cast %354 : i32 to index
    %c0_117 = arith.constant 0 : index
    %356 = vector.load %arg2[%355, %c0_117] : memref<20x128xi32, #tpu.memory_space<vmem>>, vector<1x128xi32>
    %357 = arith.addi %0, %320 : i32
    %c6_i32_118 = arith.constant 6 : i32
    %358 = arith.addi %357, %c6_i32_118 : i32
    %359 = arith.index_cast %358 : i32 to index
    %360 = memref.load %arg1[%359] : memref<112xi32, #tpu.memory_space<smem>>
    %361 = arith.index_cast %360 : i32 to index
    %c0_119 = arith.constant 0 : index
    %362 = vector.load %arg2[%361, %c0_119] : memref<20x128xi32, #tpu.memory_space<vmem>>, vector<1x128xi32>
    %363 = arith.addi %0, %320 : i32
    %c7_i32_120 = arith.constant 7 : i32
    %364 = arith.addi %363, %c7_i32_120 : i32
    %365 = arith.index_cast %364 : i32 to index
    %366 = memref.load %arg1[%365] : memref<112xi32, #tpu.memory_space<smem>>
    %367 = arith.index_cast %366 : i32 to index
    %c0_121 = arith.constant 0 : index
    %368 = vector.load %arg2[%367, %c0_121] : memref<20x128xi32, #tpu.memory_space<vmem>>, vector<1x128xi32>
    %369 = tpu.concatenate %326, %332, %338, %344, %350, %356, %362, %368 in 0 : vector<1x128xi32>, vector<1x128xi32>, vector<1x128xi32>, vector<1x128xi32>, vector<1x128xi32>, vector<1x128xi32>, vector<1x128xi32>, vector<1x128xi32> -> vector<8x128xi32>
    %370 = arith.index_cast %320 : i32 to index
    %c0_122 = arith.constant 0 : index
    %371 = vector.load %arg3[%370, %c0_122] : memref<56x128xi32, #tpu.memory_space<vmem>>, vector<8x128xi32>
    tpu.vector_store %arg3[%370, %c0_122], %369 {strides = array<i32>} : memref<56x128xi32, #tpu.memory_space<vmem>>, vector<8x128xi32>,
    %c7_i32_123 = arith.constant 7 : i32
    return
  }
  func.func @transform_0(%arg0: i32, %arg1: memref<112xi32, #tpu.memory_space<smem>>) -> (i32, i32) {
    %c0_i32 = arith.constant 0 : i32
    %c0_i32_0 = arith.constant 0 : i32
    %c0_i32_1 = arith.constant 0 : i32
    return %c0_i32, %c0_i32_0 : i32, i32
  }
  func.func @transform_1(%arg0: i32, %arg1: memref<112xi32, #tpu.memory_space<smem>>) -> (i32, i32) {
    %c0_i32 = arith.constant 0 : i32
    %c0_i32_0 = arith.constant 0 : i32
    return %arg0, %c0_i32 : i32, i32
  }
}

</mosaic_0001>

<llo_original>
// kernel: tpu_custom_call.1
$region0: #{tpu_custom_call.1}
  #allocation0 [shape = 'u32[]', space=smem, size = 0x4, offset = 0x4, fixed_abs, tag = 'smem constant byte address 0x4 - core index']
  #allocation1 [shape = 'u32[72,128]{1,0:T(1,128)}', space=vmem, size = 0x9000, scoped, tag = 'internal scratch']
  #allocation2 [shape = 's32[1]{0}', space=sflag, size = 0x4, scoped, tag = 'scoped memory for tpu_custom_call.1']
  #allocation3 [shape = 'u8[512]{0}', space=smem, size = 0x200, scoped, tag = 'prefetched SMEM operand 0']
  %s0 = inlined_call_operand.hbm [shape: s32[112], index: 0, kind: input, shape index: {}]
  %s1 = inlined_call_operand.hbm [shape: s32[20,128], index: 1, kind: input, shape index: {}]
  %s2 = inlined_call_operand.hbm [shape: s32[112,128], index: 2, kind: output, shape index: {}]
  %s3 = sld [smem:[#allocation0]]
  $region41: #{tpu_custom_call.1} parent=0
    _
  %s5 = ssub.s32 1, %s3
  %s6 = scalar_select 0, %s5, %s3
  %s8 = sshll.u32 %s0, 4
  %s9 = int_to_ptr.hbm [resolvable:$true] %s8
  %11 = dma.hbm_to_smem %s9, 16, [#allocation3], [#allocation2]
  %13 = dma.done [#allocation2], 16
  %14 = sfence
  $region1: #{tpu_custom_call.1} parent=0
    #allocation4 [shape = 'u8[12288]{0}', space=vmem, size = 0x3000, scoped, tag = 'input window, operand 1, single buffered']
    #allocation5 [shape = 's32[2]{0}', space=sflag, size = 0x8, scoped, tag = 'scoped memory for tpu_custom_call.1']
    #allocation6 [shape = 's32[2]{0}', space=sflag, size = 0x8, scoped, tag = 'scoped memory for tpu_custom_call.1']
    #allocation7 [shape = 'u8[57344]{0}', space=vmem, size = 0xe000, scoped, tag = 'output window, operand 0']
    %15 = vsyncpa [#allocation5], 0
    %16 = vsyncpa [#allocation6], 0
    %s17 = scalar_lea.sflag [#allocation6], 1
    %18 = vsyncpa %s17, 0
    loop: start=0, step=1, limit=4
    $region2: #{tpu_custom_call.1} parent=1 // loop_pre_header
      _
    $region3: #{tpu_custom_call.1} parent=1 // loop_header
      %s20 = sphi 0, %s24
      %p21 = scmp.ge.s32.totalorder %s20, 4
      %s28 = sphi 0, %s28
      %s30 = sphi 0, %s28
      %s31 = sphi 0, %s30
      %s45 = sphi 0, %s31
      %s51 = sphi 0, %s53
      %s54 = sphi 0, %s51
      %s55 = sphi 0, %s54
      %s71 = sphi 0, %s55
    $region4: #{tpu_custom_call.1} parent=1 // loop_header_branch
      %23 = sbr.rel (%p21) target = $region8
    $region5: #{tpu_custom_call.1} parent=1 // loop_body
      %s25 = ssub.s32 %s20, 1
      %s26 = ssub.s32 %s20, 2
      %s27 = sadd.s32 %s20, 1
      %s29 = sadd.s32 %s28, 1
      %p32 = scmp.eq.s32.totalorder %s20, 1
      %p33 = scmp.ne.s32.totalorder %s28, %s30
      %p34 = scmp.eq.s32.totalorder %s20, 0
      %p35 = por %p33, %p34
      %p36 = scmp.ne.s32.totalorder %s28, %s30
      %p37 = scmp.eq.s32.totalorder %s25, 1
      %p38 = por %p36, %p37
      %p39 = scmp.ne.s32.totalorder %s30, %s31
      %p40 = scmp.eq.s32.totalorder %s25, 0
      %p41 = por %p39, %p40
      %p42 = scmp.ne.s32.totalorder %s30, %s31
      %p43 = scmp.eq.s32.totalorder %s26, 1
      %p44 = por %p42, %p43
      %p46 = scmp.ne.s32.totalorder %s31, %s45
      %p47 = scmp.eq.s32.totalorder %s26, 0
      %p48 = por %p46, %p47
      %s49 = ssub.s32 %s20, %s27
      %p50 = scmp.eq.s32.totalorder %s49, 0
      %s52 = sadd.s32 %s51, 1
      %s53 = scalar_select %p50, %s51, %s52
      %p56 = pneg %p50
      %p57 = scmp.eq.s32.totalorder %s20, 1
      %p58 = por %p56, %p57
      %p59 = scmp.ne.s32.totalorder %s51, %s54
      %p60 = scmp.eq.s32.totalorder %s20, 0
      %p61 = por %p59, %p60
      %p62 = scmp.ne.s32.totalorder %s51, %s54
      %p63 = scmp.eq.s32.totalorder %s25, 1
      %p64 = por %p62, %p63
      %p65 = scmp.ne.s32.totalorder %s54, %s55
      %p66 = scmp.eq.s32.totalorder %s25, 0
      %p67 = por %p65, %p66
      %p68 = scmp.ne.s32.totalorder %s54, %s55
      %p69 = scmp.eq.s32.totalorder %s26, 1
      %p70 = por %p68, %p69
      %p72 = scmp.ne.s32.totalorder %s55, %s71
      %p73 = scmp.eq.s32.totalorder %s26, 0
      %p74 = por %p72, %p73
      %p75 = scmp.le.s32.totalorder 1, %s20
      %p76 = scmp.lt.s32.totalorder %s20, 3
      %p77 = pnand %p75, %p76
      %p78 = pneg %p77
      // Predicated region
      $region9: #{tpu_custom_call.1} parent=5 // pred_check
        _
      $region10: #{tpu_custom_call.1} parent=5 // pred_check_branch
        %80 = sbr.rel (%p77) target = $region12
      $region11: #{tpu_custom_call.1} parent=5 // pred_region
        %s81 = ssub.s32 %s20, 1
        // Predicated region
        $region13: #{tpu_custom_call.1} parent=11 // pred_check
          %p82 = pneg %p41
        $region14: #{tpu_custom_call.1} parent=11 // pred_check_branch
          %84 = sbr.rel (%p82) target = $region16
        $region15: #{tpu_custom_call.1} parent=11 // pred_region
          %86 = vsyncadd [#allocation5], 0
          %s87 = sshll.u32 %s1, 4
          %s88 = int_to_ptr.hbm [resolvable:$true] %s87
          %s89 = sshll.u32 [#allocation4], 4
          %s90 = int_to_ptr.vmem [resolvable:$true] %s89
          %95 = dma.hbm_to_vmem [thread:$0]  %s88, 384, %s90, [#allocation5], 128, 128, 8
        $region16: #{tpu_custom_call.1} parent=11 // pred_fallthru
          _
      $region12: #{tpu_custom_call.1} parent=5 // pred_fallthru
        _
      %p96 = scmp.lt.s32.totalorder %s20, 2
      // Predicated region
      $region17: #{tpu_custom_call.1} parent=5 // pred_check
        %p97 = pneg %p96
      $region18: #{tpu_custom_call.1} parent=5 // pred_check_branch
        %99 = sbr.rel (%p97) target = $region20
      $region19: #{tpu_custom_call.1} parent=5 // pred_region
        _
      $region20: #{tpu_custom_call.1} parent=5 // pred_fallthru
        _
      %p100 = scmp.le.s32.totalorder 1, %s20
      %p101 = scmp.lt.s32.totalorder %s20, 3
      %p102 = pnand %p100, %p101
      %p103 = pneg %p102
      // Predicated region
      $region21: #{tpu_custom_call.1} parent=5 // pred_check
        _
      $region22: #{tpu_custom_call.1} parent=5 // pred_check_branch
        %105 = sbr.rel (%p102) target = $region24
      $region23: #{tpu_custom_call.1} parent=5 // pred_region
        %s106 = ssub.s32 %s20, 1
        // Predicated region
        $region25: #{tpu_custom_call.1} parent=23 // pred_check
          %p107 = pneg %p41
        $region26: #{tpu_custom_call.1} parent=23 // pred_check_branch
          %109 = sbr.rel (%p107) target = $region28
        $region27: #{tpu_custom_call.1} parent=23 // pred_region
          %111 = dma.done [#allocation5], 384
        $region28: #{tpu_custom_call.1} parent=23 // pred_fallthru
          _
        %p112 = pneg %p41
        %p113 = pneg %p38
        %p114 = pneg %p67
        %p115 = pneg %p64
        %s116 = sand.u32 %s54, 1
        %s117 = scalar_lea.sflag [#allocation6], %s116
        %s118 = sand.u32 %s54, 1
        %s119 = smul.addr %s118, 56
        %s120 = scalar_lea.vmem [#allocation7], %s119
        %s121 = smul.u32 7, %s25
        %s122 = smul.u32 %s25, 56
        %s123 = sadd.s32 %s122, 0
        %s124 = sld [smem:[#allocation3 + %s123]]
        %s125 = scalar_lea.vmem [#allocation4], %s124
        %v126 = vld [vmem:[%s125] sm:$0x1]
        %s127 = sadd.s32 %s123, 1
        %s128 = sld [smem:[#allocation3 + %s127]]
        %s129 = scalar_lea.vmem [#allocation4], %s128
        %v130 = vld [vmem:[%s129] sm:$0x1]
        %s131 = sadd.s32 %s123, 2
        %s132 = sld [smem:[#allocation3 + %s131]]
        %s133 = scalar_lea.vmem [#allocation4], %s132
        %v134 = vld [vmem:[%s133] sm:$0x1]
        %s135 = sadd.s32 %s123, 3
        %s136 = sld [smem:[#allocation3 + %s135]]
        %s137 = scalar_lea.vmem [#allocation4], %s136
        %v138 = vld [vmem:[%s137] sm:$0x1]
        %s139 = sadd.s32 %s123, 4
        %s140 = sld [smem:[#allocation3 + %s139]]
        %s141 = scalar_lea.vmem [#allocation4], %s140
        %v142 = vld [vmem:[%s141] sm:$0x1]
        %s143 = sadd.s32 %s123, 5
        %s144 = sld [smem:[#allocation3 + %s143]]
        %s145 = scalar_lea.vmem [#allocation4], %s144
        %v146 = vld [vmem:[%s145] sm:$0x1]
        %s147 = sadd.s32 %s123, 6
        %s148 = sld [smem:[#allocation3 + %s147]]
        %s149 = scalar_lea.vmem [#allocation4], %s148
        %v150 = vld [vmem:[%s149] sm:$0x1]
        %s151 = sadd.s32 %s123, 7
        %s152 = sld [smem:[#allocation3 + %s151]]
        %s153 = scalar_lea.vmem [#allocation4], %s152
        %v154 = vld [vmem:[%s153] sm:$0x1]
        %v155 = vrot.slane %v130, 7
        %v156 = vrot.slane %v134, 6
        %v157 = vrot.slane %v138, 5
        %v158 = vrot.slane %v142, 4
        %v159 = vrot.slane %v146, 3
        %v160 = vrot.slane %v150, 2
        %v161 = vrot.slane %v154, 1
        %vm162 = vcmask 1040384
        %v163 = vsel %vm162, %v126, %v155
        %vm164 = vcmask 1041408
        %v165 = vsel %vm164, %v163, %v156
        %vm166 = vcmask 1042432
        %v167 = vsel %vm166, %v165, %v157
        %vm168 = vcmask 1043456
        %v169 = vsel %vm168, %v167, %v158
        %vm170 = vcmask 1044480
        %v171 = vsel %vm170, %v169, %v159
        %vm172 = vcmask 1045504
        %v173 = vsel %vm172, %v171, %v160
        %vm174 = vcmask 1046528
        %v175 = vsel %vm174, %v173, %v161
        %176 = vst [vmem:[%s120] sm:$0xff] %v175
        %s177 = sadd.s32 %s122, 8
        %s178 = sld [smem:[#allocation3 + %s177]]
        %s179 = scalar_lea.vmem [#allocation4], %s178
        %v180 = vld [vmem:[%s179] sm:$0x1]
        %s181 = sadd.s32 %s177, 1
        %s182 = sld [smem:[#allocation3 + %s181]]
        %s183 = scalar_lea.vmem [#allocation4], %s182
        %v184 = vld [vmem:[%s183] sm:$0x1]
        %s185 = sadd.s32 %s177, 2
        %s186 = sld [smem:[#allocation3 + %s185]]
        %s187 = scalar_lea.vmem [#allocation4], %s186
        %v188 = vld [vmem:[%s187] sm:$0x1]
        %s189 = sadd.s32 %s177, 3
        %s190 = sld [smem:[#allocation3 + %s189]]
        %s191 = scalar_lea.vmem [#allocation4], %s190
        %v192 = vld [vmem:[%s191] sm:$0x1]
        %s193 = sadd.s32 %s177, 4
        %s194 = sld [smem:[#allocation3 + %s193]]
        %s195 = scalar_lea.vmem [#allocation4], %s194
        %v196 = vld [vmem:[%s195] sm:$0x1]
        %s197 = sadd.s32 %s177, 5
        %s198 = sld [smem:[#allocation3 + %s197]]
        %s199 = scalar_lea.vmem [#allocation4], %s198
        %v200 = vld [vmem:[%s199] sm:$0x1]
        %s201 = sadd.s32 %s177, 6
        %s202 = sld [smem:[#allocation3 + %s201]]
        %s203 = scalar_lea.vmem [#allocation4], %s202
        %v204 = vld [vmem:[%s203] sm:$0x1]
        %s205 = sadd.s32 %s177, 7
        %s206 = sld [smem:[#allocation3 + %s205]]
        %s207 = scalar_lea.vmem [#allocation4], %s206
        %v208 = vld [vmem:[%s207] sm:$0x1]
        %v209 = vrot.slane %v184, 7
        %v210 = vrot.slane %v188, 6
        %v211 = vrot.slane %v192, 5
        %v212 = vrot.slane %v196, 4
        %v213 = vrot.slane %v200, 3
        %v214 = vrot.slane %v204, 2
        %v215 = vrot.slane %v208, 1
        %v216 = vsel %vm162, %v180, %v209
        %v217 = vsel %vm164, %v216, %v210
        %v218 = vsel %vm166, %v217, %v211
        %v219 = vsel %vm168, %v218, %v212
        %v220 = vsel %vm170, %v219, %v213
        %v221 = vsel %vm172, %v220, %v214
        %v222 = vsel %vm174, %v221, %v215
        %s223 = scalar_lea.vmem %s120, 8 [#allocation7]
        %224 = vst [vmem:[%s223] sm:$0xff] %v222
        %s225 = sadd.s32 %s122, 16
        %s226 = sld [smem:[#allocation3 + %s225]]
        %s227 = scalar_lea.vmem [#allocation4], %s226
        %v228 = vld [vmem:[%s227] sm:$0x1]
        %s229 = sadd.s32 %s225, 1
        %s230 = sld [smem:[#allocation3 + %s229]]
        %s231 = scalar_lea.vmem [#allocation4], %s230
        %v232 = vld [vmem:[%s231] sm:$0x1]
        %s233 = sadd.s32 %s225, 2
        %s234 = sld [smem:[#allocation3 + %s233]]
        %s235 = scalar_lea.vmem [#allocation4], %s234
        %v236 = vld [vmem:[%s235] sm:$0x1]
        %s237 = sadd.s32 %s225, 3
        %s238 = sld [smem:[#allocation3 + %s237]]
        %s239 = scalar_lea.vmem [#allocation4], %s238
        %v240 = vld [vmem:[%s239] sm:$0x1]
        %s241 = sadd.s32 %s225, 4
        %s242 = sld [smem:[#allocation3 + %s241]]
        %s243 = scalar_lea.vmem [#allocation4], %s242
        %v244 = vld [vmem:[%s243] sm:$0x1]
        %s245 = sadd.s32 %s225, 5
        %s246 = sld [smem:[#allocation3 + %s245]]
        %s247 = scalar_lea.vmem [#allocation4], %s246
        %v248 = vld [vmem:[%s247] sm:$0x1]
        %s249 = sadd.s32 %s225, 6
        %s250 = sld [smem:[#allocation3 + %s249]]
        %s251 = scalar_lea.vmem [#allocation4], %s250
        %v252 = vld [vmem:[%s251] sm:$0x1]
        %s253 = sadd.s32 %s225, 7
        %s254 = sld [smem:[#allocation3 + %s253]]
        %s255 = scalar_lea.vmem [#allocation4], %s254
        %v256 = vld [vmem:[%s255] sm:$0x1]
        %v257 = vrot.slane %v232, 7
        %v258 = vrot.slane %v236, 6
        %v259 = vrot.slane %v240, 5
        %v260 = vrot.slane %v244, 4
        %v261 = vrot.slane %v248, 3
        %v262 = vrot.slane %v252, 2
        %v263 = vrot.slane %v256, 1
        %v264 = vsel %vm162, %v228, %v257
        %v265 = vsel %vm164, %v264, %v258
        %v266 = vsel %vm166, %v265, %v259
        %v267 = vsel %vm168, %v266, %v260
        %v268 = vsel %vm170, %v267, %v261
        %v269 = vsel %vm172, %v268, %v262
        %v270 = vsel %vm174, %v269, %v263
        %s271 = scalar_lea.vmem %s120, 16 [#allocation7]
        %272 = vst [vmem:[%s271] sm:$0xff] %v270
        %s273 = sadd.s32 %s122, 24
        %s274 = sld [smem:[#allocation3 + %s273]]
        %s275 = scalar_lea.vmem [#allocation4], %s274
        %v276 = vld [vmem:[%s275] sm:$0x1]
        %s277 = sadd.s32 %s273, 1
        %s278 = sld [smem:[#allocation3 + %s277]]
        %s279 = scalar_lea.vmem [#allocation4], %s278
        %v280 = vld [vmem:[%s279] sm:$0x1]
        %s281 = sadd.s32 %s273, 2
        %s282 = sld [smem:[#allocation3 + %s281]]
        %s283 = scalar_lea.vmem [#allocation4], %s282
        %v284 = vld [vmem:[%s283] sm:$0x1]
        %s285 = sadd.s32 %s273, 3
        %s286 = sld [smem:[#allocation3 + %s285]]
        %s287 = scalar_lea.vmem [#allocation4], %s286
        %v288 = vld [vmem:[%s287] sm:$0x1]
        %s289 = sadd.s32 %s273, 4
        %s290 = sld [smem:[#allocation3 + %s289]]
        %s291 = scalar_lea.vmem [#allocation4], %s290
        %v292 = vld [vmem:[%s291] sm:$0x1]
        %s293 = sadd.s32 %s273, 5
        %s294 = sld [smem:[#allocation3 + %s293]]
        %s295 = scalar_lea.vmem [#allocation4], %s294
        %v296 = vld [vmem:[%s295] sm:$0x1]
        %s297 = sadd.s32 %s273, 6
        %s298 = sld [smem:[#allocation3 + %s297]]
        %s299 = scalar_lea.vmem [#allocation4], %s298
        %v300 = vld [vmem:[%s299] sm:$0x1]
        %s301 = sadd.s32 %s273, 7
        %s302 = sld [smem:[#allocation3 + %s301]]
        %s303 = scalar_lea.vmem [#allocation4], %s302
        %v304 = vld [vmem:[%s303] sm:$0x1]
        %v305 = vrot.slane %v280, 7
        %v306 = vrot.slane %v284, 6
        %v307 = vrot.slane %v288, 5
        %v308 = vrot.slane %v292, 4
        %v309 = vrot.slane %v296, 3
        %v310 = vrot.slane %v300, 2
        %v311 = vrot.slane %v304, 1
        %v312 = vsel %vm162, %v276, %v305
        %v313 = vsel %vm164, %v312, %v306
        %v314 = vsel %vm166, %v313, %v307
        %v315 = vsel %vm168, %v314, %v308
        %v316 = vsel %vm170, %v315, %v309
        %v317 = vsel %vm172, %v316, %v310
        %v318 = vsel %vm174, %v317, %v311
        %s319 = scalar_lea.vmem %s120, 24 [#allocation7]
        %320 = vst [vmem:[%s319] sm:$0xff] %v318
        %s321 = sadd.s32 %s122, 32
        %s322 = sld [smem:[#allocation3 + %s321]]
        %s323 = scalar_lea.vmem [#allocation4], %s322
        %v324 = vld [vmem:[%s323] sm:$0x1]
        %s325 = sadd.s32 %s321, 1
        %s326 = sld [smem:[#allocation3 + %s325]]
        %s327 = scalar_lea.vmem [#allocation4], %s326
        %v328 = vld [vmem:[%s327] sm:$0x1]
        %s329 = sadd.s32 %s321, 2
        %s330 = sld [smem:[#allocation3 + %s329]]
        %s331 = scalar_lea.vmem [#allocation4], %s330
        %v332 = vld [vmem:[%s331] sm:$0x1]
        %s333 = sadd.s32 %s321, 3
        %s334 = sld [smem:[#allocation3 + %s333]]
        %s335 = scalar_lea.vmem [#allocation4], %s334
        %v336 = vld [vmem:[%s335] sm:$0x1]
        %s337 = sadd.s32 %s321, 4
        %s338 = sld [smem:[#allocation3 + %s337]]
        %s339 = scalar_lea.vmem [#allocation4], %s338
        %v340 = vld [vmem:[%s339] sm:$0x1]
        %s341 = sadd.s32 %s321, 5
        %s342 = sld [smem:[#allocation3 + %s341]]
        %s343 = scalar_lea.vmem [#allocation4], %s342
        %v344 = vld [vmem:[%s343] sm:$0x1]
        %s345 = sadd.s32 %s321, 6
        %s346 = sld [smem:[#allocation3 + %s345]]
        %s347 = scalar_lea.vmem [#allocation4], %s346
        %v348 = vld [vmem:[%s347] sm:$0x1]
        %s349 = sadd.s32 %s321, 7
        %s350 = sld [smem:[#allocation3 + %s349]]
        %s351 = scalar_lea.vmem [#allocation4], %s350
        %v352 = vld [vmem:[%s351] sm:$0x1]
        %v353 = vrot.slane %v328, 7
        %v354 = vrot.slane %v332, 6
        %v355 = vrot.slane %v336, 5
        %v356 = vrot.slane %v340, 4
        %v357 = vrot.slane %v344, 3
        %v358 = vrot.slane %v348, 2
        %v359 = vrot.slane %v352, 1
        %v360 = vsel %vm162, %v324, %v353
        %v361 = vsel %vm164, %v360, %v354
        %v362 = vsel %vm166, %v361, %v355
        %v363 = vsel %vm168, %v362, %v356
        %v364 = vsel %vm170, %v363, %v357
        %v365 = vsel %vm172, %v364, %v358
        %v366 = vsel %vm174, %v365, %v359
        %s367 = scalar_lea.vmem %s120, 32 [#allocation7]
        %368 = vst [vmem:[%s367] sm:$0xff] %v366
        %s369 = sadd.s32 %s122, 40
        %s370 = sld [smem:[#allocation3 + %s369]]
        %s371 = scalar_lea.vmem [#allocation4], %s370
        %v372 = vld [vmem:[%s371] sm:$0x1]
        %s373 = sadd.s32 %s369, 1
        %s374 = sld [smem:[#allocation3 + %s373]]
        %s375 = scalar_lea.vmem [#allocation4], %s374
        %v376 = vld [vmem:[%s375] sm:$0x1]
        %s377 = sadd.s32 %s369, 2
        %s378 = sld [smem:[#allocation3 + %s377]]
        %s379 = scalar_lea.vmem [#allocation4], %s378
        %v380 = vld [vmem:[%s379] sm:$0x1]
        %s381 = sadd.s32 %s369, 3
        %s382 = sld [smem:[#allocation3 + %s381]]
        %s383 = scalar_lea.vmem [#allocation4], %s382
        %v384 = vld [vmem:[%s383] sm:$0x1]
        %s385 = sadd.s32 %s369, 4
        %s386 = sld [smem:[#allocation3 + %s385]]
        %s387 = scalar_lea.vmem [#allocation4], %s386
        %v388 = vld [vmem:[%s387] sm:$0x1]
        %s389 = sadd.s32 %s369, 5
        %s390 = sld [smem:[#allocation3 + %s389]]
        %s391 = scalar_lea.vmem [#allocation4], %s390
        %v392 = vld [vmem:[%s391] sm:$0x1]
        %s393 = sadd.s32 %s369, 6
        %s394 = sld [smem:[#allocation3 + %s393]]
        %s395 = scalar_lea.vmem [#allocation4], %s394
        %v396 = vld [vmem:[%s395] sm:$0x1]
        %s397 = sadd.s32 %s369, 7
        %s398 = sld [smem:[#allocation3 + %s397]]
        %s399 = scalar_lea.vmem [#allocation4], %s398
        %v400 = vld [vmem:[%s399] sm:$0x1]
        %v401 = vrot.slane %v376, 7
        %v402 = vrot.slane %v380, 6
        %v403 = vrot.slane %v384, 5
        %v404 = vrot.slane %v388, 4
        %v405 = vrot.slane %v392, 3
        %v406 = vrot.slane %v396, 2
        %v407 = vrot.slane %v400, 1
        %v408 = vsel %vm162, %v372, %v401
        %v409 = vsel %vm164, %v408, %v402
        %v410 = vsel %vm166, %v409, %v403
        %v411 = vsel %vm168, %v410, %v404
        %v412 = vsel %vm170, %v411, %v405
        %v413 = vsel %vm172, %v412, %v406
        %v414 = vsel %vm174, %v413, %v407
        %s415 = scalar_lea.vmem %s120, 40 [#allocation7]
        %416 = vst [vmem:[%s415] sm:$0xff] %v414
        %s417 = sadd.s32 %s122, 48
        %s418 = sld [smem:[#allocation3 + %s417]]
        %s419 = scalar_lea.vmem [#allocation4], %s418
        %v420 = vld [vmem:[%s419] sm:$0x1]
        %s421 = sadd.s32 %s417, 1
        %s422 = sld [smem:[#allocation3 + %s421]]
        %s423 = scalar_lea.vmem [#allocation4], %s422
        %v424 = vld [vmem:[%s423] sm:$0x1]
        %s425 = sadd.s32 %s417, 2
        %s426 = sld [smem:[#allocation3 + %s425]]
        %s427 = scalar_lea.vmem [#allocation4], %s426
        %v428 = vld [vmem:[%s427] sm:$0x1]
        %s429 = sadd.s32 %s417, 3
        %s430 = sld [smem:[#allocation3 + %s429]]
        %s431 = scalar_lea.vmem [#allocation4], %s430
        %v432 = vld [vmem:[%s431] sm:$0x1]
        %s433 = sadd.s32 %s417, 4
        %s434 = sld [smem:[#allocation3 + %s433]]
        %s435 = scalar_lea.vmem [#allocation4], %s434
        %v436 = vld [vmem:[%s435] sm:$0x1]
        %s437 = sadd.s32 %s417, 5
        %s438 = sld [smem:[#allocation3 + %s437]]
        %s439 = scalar_lea.vmem [#allocation4], %s438
        %v440 = vld [vmem:[%s439] sm:$0x1]
        %s441 = sadd.s32 %s417, 6
        %s442 = sld [smem:[#allocation3 + %s441]]
        %s443 = scalar_lea.vmem [#allocation4], %s442
        %v444 = vld [vmem:[%s443] sm:$0x1]
        %s445 = sadd.s32 %s417, 7
        %s446 = sld [smem:[#allocation3 + %s445]]
        %s447 = scalar_lea.vmem [#allocation4], %s446
        %v448 = vld [vmem:[%s447] sm:$0x1]
        %v449 = vrot.slane %v424, 7
        %v450 = vrot.slane %v428, 6
        %v451 = vrot.slane %v432, 5
        %v452 = vrot.slane %v436, 4
        %v453 = vrot.slane %v440, 3
        %v454 = vrot.slane %v444, 2
        %v455 = vrot.slane %v448, 1
        %v456 = vsel %vm162, %v420, %v449
        %v457 = vsel %vm164, %v456, %v450
        %v458 = vsel %vm166, %v457, %v451
        %v459 = vsel %vm168, %v458, %v452
        %v460 = vsel %vm170, %v459, %v453
        %v461 = vsel %vm172, %v460, %v454
        %v462 = vsel %vm174, %v461, %v455
        %s463 = scalar_lea.vmem %s120, 48 [#allocation7]
        %464 = vst [vmem:[%s463] sm:$0xff] %v462
        %s465 = sand.u32 %s54, 1
        %s466 = scalar_lea.sflag [#allocation6], %s465
        %s467 = sand.u32 %s54, 1
        %s468 = smul.addr %s467, 56
        %s469 = scalar_lea.vmem [#allocation7], %s468
        // Predicated region
        $region29: #{tpu_custom_call.1} parent=23 // pred_check
          %p470 = pneg %p64
        $region30: #{tpu_custom_call.1} parent=23 // pred_check_branch
          %472 = sbr.rel (%p470) target = $region32
        $region31: #{tpu_custom_call.1} parent=23 // pred_region
          %s473 = smul.u32 7, %s25
          %475 = vsyncadd %s466, 0
          %s476 = smul.addr %s473, 8
          %s477 = scalar_lea.hbm %s2, %s476
          %s478 = sshll.u32 %s469, 4
          %s479 = int_to_ptr.vmem [resolvable:$true] %s478
          %s480 = sshll.u32 %s477, 4
          %s481 = int_to_ptr.hbm [resolvable:$true] %s480
          %486 = dma.vmem_to_hbm [thread:$0]  %s479, 896, %s481, %s466, 128, 128, 8
        $region32: #{tpu_custom_call.1} parent=23 // pred_fallthru
          _
      $region24: #{tpu_custom_call.1} parent=5 // pred_fallthru
        _
      %p487 = scmp.le.s32.totalorder 2, %s20
      // Predicated region
      $region33: #{tpu_custom_call.1} parent=5 // pred_check
        %p488 = pneg %p487
      $region34: #{tpu_custom_call.1} parent=5 // pred_check_branch
        %490 = sbr.rel (%p488) target = $region36
      $region35: #{tpu_custom_call.1} parent=5 // pred_region
        %s491 = ssub.s32 %s20, 2
        // Predicated region
        $region37: #{tpu_custom_call.1} parent=35 // pred_check
          %p492 = pneg %p70
        $region38: #{tpu_custom_call.1} parent=35 // pred_check_branch
          %494 = sbr.rel (%p492) target = $region40
        $region39: #{tpu_custom_call.1} parent=35 // pred_region
          %s495 = sand.u32 %s55, 1
          %s496 = scalar_lea.sflag [#allocation6], %s495
          %s497 = sand.u32 %s55, 1
          %s498 = smul.addr %s497, 56
          %s499 = scalar_lea.vmem [#allocation7], %s498
          %501 = dma.done %s496, 896
        $region40: #{tpu_custom_call.1} parent=35 // pred_fallthru
          _
      $region36: #{tpu_custom_call.1} parent=5 // pred_fallthru
        _
    $region6: #{tpu_custom_call.1} parent=1 // loop_footer
      %s24 = sadd.s32 1, %s20
    $region7: #{tpu_custom_call.1} parent=1 // loop_footer_branch
      %19 = sbr.rel target = $region3
    $region8: #{tpu_custom_call.1} parent=1 // loop_exit
      _
    %502 = vsyncpa [#allocation5], 1
    %s503 = scalar_lea.sflag [#allocation5], 1
    %504 = vsyncpa %s503, 1
    %505 = vsyncpa [#allocation6], 1
    %s506 = scalar_lea.sflag [#allocation6], 1
    %507 = vsyncpa %s506, 1

</llo_original>
